<compile_context>
chip_gen: v6e
topology: v6e:2x2x1
jax: 0.10.0
libtpu: 0.0.40
codegen_flags: <defaults>
</compile_context>

<pallas_src>
import functools

import jax
import jax.numpy as jnp
from jax import lax
from jax.experimental import pallas as pl
from jax.experimental.pallas import tpu as pltpu

LANE = 128          # lane width / padded hidden2
HID1 = 128
HID2 = 64
SMALL_BATCH = 128   # <= this: single-block, no grid
MAX_TILE = 2048


def _round_up(n, m):
    return ((n + m - 1) // m) * m


def dqn_kernel(x_ref, w1_ref, b1_ref, w2_ref, b2_ref, w3t_ref, b3t_ref, out_ref):
    # fc1 + relu  (bf16 MXU operands, f32 accumulation, f32 elementwise)
    x = x_ref[...].astype(jnp.bfloat16)
    h1 = jnp.dot(x, w1_ref[...], preferred_element_type=jnp.float32) + b1_ref[...]
    h1 = jnp.maximum(h1, 0.0)
    # fc2 + relu  (hidden2 padded 64 -> 128; padded columns stay 0 after relu)
    h2 = jnp.dot(h1.astype(jnp.bfloat16), w2_ref[...],
                 preferred_element_type=jnp.float32) + b2_ref[...]
    h2 = jnp.maximum(h2, 0.0)
    # fc3, transposed: (out_pad8, 128) x (tile, 128) contracting the hidden dim
    # -> (out_pad8, tile).  Tiny, lane-dense output block (batch on lanes).
    out_t = lax.dot_general(w3t_ref[...], h2.astype(jnp.bfloat16),
                            (((1,), (1,)), ((), ())),
                            preferred_element_type=jnp.float32)
    out_ref[...] = (out_t + b3t_ref[...]).astype(out_ref.dtype)


def _pick_tile(batch, in_dim):
    # ~8 grid steps (>= 2 per v7x TensorCore), 128-aligned, capped so the
    # double-buffered x block stays within a few MiB of VMEM.
    t = _round_up(pl.cdiv(batch, 8), 128)
    x_cap = max(128, ((4 << 20) // (in_dim * 4)) // 128 * 128)
    return int(max(128, min(t, MAX_TILE, x_cap)))


def _vmem_limit(tile, in_dim, out_pad, x_bytes):
    weights = (in_dim * HID1 + HID1 * LANE + out_pad * LANE) * 2 \
              + (2 * LANE + out_pad) * 4
    x_buf = 2 * tile * in_dim * x_bytes          # double-buffered x block
    out_buf = 2 * out_pad * tile * 4             # double-buffered out block
    inter = 3 * tile * LANE * 4                  # h1/h2/out f32 intermediates
    est = weights + x_buf + out_buf + inter
    return int(min(64 << 20, max(32 << 20, 2 * est + (2 << 20))))


def _cost_estimate(batch, in_dim, out_pad, x_bytes):
    flops = 2 * batch * (in_dim * HID1 + HID1 * LANE + LANE * out_pad)
    bytes_accessed = (
        batch * in_dim * x_bytes                                 # x
        + (in_dim * HID1 + HID1 * LANE + out_pad * LANE) * 2     # bf16 weights
        + (2 * LANE + out_pad) * 4                               # f32 biases
        + out_pad * batch * 4                                    # output (f32)
    )
    return pl.CostEstimate(flops=flops, transcendentals=0,
                           bytes_accessed=bytes_accessed)


@functools.partial(jax.jit, static_argnames=("out_dim",))
def _dqn_forward_impl(x, w1, b1, w2, b2, w3t, b3t, *, out_dim):
    B, in_dim = x.shape
    out_pad = w3t.shape[0]
    xb = x.dtype.itemsize
    args = (x, w1, b1, w2, b2, w3t, b3t)

    if B <= SMALL_BATCH:
        # Tiny batch: whole-array blocks, no grid (gridding a latency-bound
        # kernel only adds per-step overhead).
        full = lambda a: pl.BlockSpec(a.shape, lambda: (0,) * a.ndim)
        out_t = pl.pallas_call(
            dqn_kernel,
            out_shape=jax.ShapeDtypeStruct((out_pad, B), jnp.float32),
            grid=(),
            in_specs=[full(a) for a in args],
            out_specs=pl.BlockSpec((out_pad, B), lambda: (0, 0)),
            cost_estimate=_cost_estimate(B, in_dim, out_pad, xb),
        )(*args)
    else:
        # Gridded path: 1-D batch grid, weights resident in VMEM (constant
        # index maps), batch axis "parallel" so v7x shards it across both TCs.
        tile = _pick_tile(B, in_dim)
        grid = (pl.cdiv(B, tile),)
        resident = lambda a: pl.BlockSpec(a.shape, lambda i: (0,) * a.ndim)
        out_t = pl.pallas_call(
            dqn_kernel,
            out_shape=jax.ShapeDtypeStruct((out_pad, B), jnp.float32),
            grid=grid,
            in_specs=[pl.BlockSpec((tile, in_dim), lambda i: (i, 0)),
                      resident(w1), resident(b1), resident(w2), resident(b2),
                      resident(w3t), resident(b3t)],
            out_specs=pl.BlockSpec((out_pad, tile), lambda i: (0, i)),
            compiler_params=pltpu.CompilerParams(
                dimension_semantics=("parallel",),
                vmem_limit_bytes=_vmem_limit(tile, in_dim, out_pad, xb)),
            cost_estimate=_cost_estimate(B, in_dim, out_pad, xb),
        )(*args)

    # (out_pad8, B) -> (B, out_dim); cheap slice+transpose of a tiny slab.
    return out_t[:out_dim, :].T


def dqn_forward(x, params):
    """x: (B, input_dim) float32 (or bfloat16). params: dict from init_params."""
    return _dqn_forward_impl(
        x, params["w1"], params["b1"], params["w2"], params["b2"],
        params["w3t"], params["b3t"], out_dim=params["out_dim"])


def init_params(key, input_dim, output_dim):
    """PyTorch-style uniform init; bf16 weights, lane-dense padded layouts."""
    assert output_dim >= 1
    ks = jax.random.split(key, 6)

    def lin(kw, kb, fan_in, fan_out):
        bound = 1.0 / (fan_in ** 0.5)
        w = jax.random.uniform(kw, (fan_in, fan_out), jnp.float32, -bound, bound)
        b = jax.random.uniform(kb, (fan_out,), jnp.float32, -bound, bound)
        return w, b

    w1, b1 = lin(ks[0], ks[1], input_dim, HID1)          # (in, 128), (128,)
    w2, b2 = lin(ks[2], ks[3], HID1, HID2)               # (128, 64), (64,)
    w3, b3 = lin(ks[4], ks[5], HID2, output_dim)         # (64, out), (out,)

    out_pad = _round_up(output_dim, 8)

    # Hidden2 padded 64 -> 128 (lane-dense); padded h2 columns are 0 post-relu.
    w2p = jnp.pad(w2, ((0, 0), (0, LANE - HID2)))
    b2p = jnp.pad(b2, (0, LANE - HID2))
    # Last layer stored transposed: (out_pad8, 128); padded rows/cols are 0 and
    # the wrapper slices off the padded sublanes.
    w3t = jnp.pad(w3.T, ((0, out_pad - output_dim), (0, LANE - HID2)))
    b3t = jnp.pad(b3.reshape(-1, 1), ((0, out_pad - output_dim), (0, 0)))

    return {
        "w1": w1.astype(jnp.bfloat16), "b1": b1.reshape(1, HID1),
        "w2": w2p.astype(jnp.bfloat16), "b2": b2p.reshape(1, LANE),
        "w3t": w3t.astype(jnp.bfloat16), "b3t": b3t,
        "out_dim": int(output_dim),
    }


def dqn_reference(x, p):
    """Same math as the kernel (bf16 MXU operands, f32 accumulation)."""
    h1 = jnp.maximum(
        jnp.dot(x.astype(jnp.bfloat16), p["w1"],
                preferred_element_type=jnp.float32) + p["b1"], 0.0)
    h2 = jnp.maximum(
        jnp.dot(h1.astype(jnp.bfloat16), p["w2"],
                preferred_element_type=jnp.float32) + p["b2"], 0.0)
    out_t = lax.dot_general(p["w3t"], h2.astype(jnp.bfloat16),
                            (((1,), (1,)), ((), ())),
                            preferred_element_type=jnp.float32) + p["b3t"]
    return out_t[:p["out_dim"], :].T


if __name__ == "__main__":
    key = jax.random.PRNGKey(0)
    k_x, k_p, k_mid, k_big = jax.random.split(key, 4)

    B, input_dim, output_dim = 8, 32, 4
    params = init_params(k_p, input_dim, output_dim)

    # Small batch (grid=() path).
    x = jax.random.normal(k_x, (B, input_dim), jnp.float32)
    out = dqn_forward(x, params)
    jax.block_until_ready(out)
    ref = dqn_reference(x, params)
    assert out.shape == (B, output_dim)
    assert jnp.allclose(out, ref, atol=1e-3, rtol=1e-3)

    # Mid-size batch: gridded "parallel" path with a partial boundary block.
    xm = jax.random.normal(k_mid, (200, input_dim), jnp.float32)
    outm = dqn_forward(xm, params)
    jax.block_until_ready(outm)
    refm = dqn_reference(xm, params)
    assert outm.shape == (200, output_dim)
    assert jnp.allclose(outm, refm, atol=1e-3, rtol=1e-3)

    # Larger batch: gridded, resident-weight, multi-tile path.
    xb = jax.random.normal(k_big, (1024, input_dim), jnp.float32)
    outb = dqn_forward(xb, params)
    jax.block_until_ready(outb)
    refb = dqn_reference(xb, params)
    assert outb.shape == (1024, output_dim)
    assert jnp.allclose(outb, refb, atol=1e-3, rtol=1e-3)

    print("KERNEL_OK")
</pallas_src>

<mosaic_0001>
module attributes {stable_mosaic.version = 11 : i64} {
  func.func @dqn_kernel(%arg0: memref<8x32xf32, #tpu.memory_space<vmem>>, %arg1: memref<32x128xbf16, #tpu.memory_space<vmem>>, %arg2: memref<1x128xf32, #tpu.memory_space<vmem>>, %arg3: memref<128x128xbf16, #tpu.memory_space<vmem>>, %arg4: memref<1x128xf32, #tpu.memory_space<vmem>>, %arg5: memref<8x128xbf16, #tpu.memory_space<vmem>>, %arg6: memref<8x1xf32, #tpu.memory_space<vmem>>, %arg7: memref<8x8xf32, #tpu.memory_space<vmem>>) attributes {dimension_semantics = [], scalar_prefetch = 0 : i64, scratch_operands = 0 : i64, tpu.core_type = #tpu.core_type<tc>} {
    %c0 = arith.constant 0 : index
    %c0_0 = arith.constant 0 : index
    %0 = vector.load %arg0[%c0, %c0_0] : memref<8x32xf32, #tpu.memory_space<vmem>>, vector<8x32xf32>
    %1 = arith.truncf %0 : vector<8x32xf32> to vector<8x32xbf16>
    %c0_1 = arith.constant 0 : index
    %c0_2 = arith.constant 0 : index
    %2 = vector.load %arg1[%c0_1, %c0_2] : memref<32x128xbf16, #tpu.memory_space<vmem>>, vector<32x128xbf16>
    %cst = arith.constant dense<0.000000e+00> : vector<8x128xf32>
    %3 = tpu.matmul %1, %2, %cst {dimension_numbers = #tpu.dot_dimension_numbers<[1], [0], [0], [1], [0, 0, 1, 1], [], []>} : vector<8x32xbf16>, vector<32x128xbf16>, vector<8x128xf32> -> vector<8x128xf32>
    %c0_3 = arith.constant 0 : index
    %c0_4 = arith.constant 0 : index
    %4 = vector.load %arg2[%c0_3, %c0_4] : memref<1x128xf32, #tpu.memory_space<vmem>>, vector<1x128xf32>
    %5 = vector.broadcast %4 : vector<1x128xf32> to vector<8x128xf32>
    %6 = arith.addf %3, %5 : vector<8x128xf32>
    %cst_5 = arith.constant 0.000000e+00 : f32
    %7 = vector.broadcast %cst_5 : f32 to vector<8x128xf32>
    %8 = arith.maximumf %6, %7 : vector<8x128xf32>
    %9 = arith.truncf %8 : vector<8x128xf32> to vector<8x128xbf16>
    %c0_6 = arith.constant 0 : index
    %c0_7 = arith.constant 0 : index
    %10 = vector.load %arg3[%c0_6, %c0_7] : memref<128x128xbf16, #tpu.memory_space<vmem>>, vector<128x128xbf16>
    %cst_8 = arith.constant dense<0.000000e+00> : vector<8x128xf32>
    %11 = tpu.matmul %9, %10, %cst_8 {dimension_numbers = #tpu.dot_dimension_numbers<[1], [0], [0], [1], [0, 0, 1, 1], [], []>} : vector<8x128xbf16>, vector<128x128xbf16>, vector<8x128xf32> -> vector<8x128xf32>
    %c0_9 = arith.constant 0 : index
    %c0_10 = arith.constant 0 : index
    %12 = vector.load %arg4[%c0_9, %c0_10] : memref<1x128xf32, #tpu.memory_space<vmem>>, vector<1x128xf32>
    %13 = vector.broadcast %12 : vector<1x128xf32> to vector<8x128xf32>
    %14 = arith.addf %11, %13 : vector<8x128xf32>
    %cst_11 = arith.constant 0.000000e+00 : f32
    %15 = vector.broadcast %cst_11 : f32 to vector<8x128xf32>
    %16 = arith.maximumf %14, %15 : vector<8x128xf32>
    %c0_12 = arith.constant 0 : index
    %c0_13 = arith.constant 0 : index
    %17 = vector.load %arg5[%c0_12, %c0_13] : memref<8x128xbf16, #tpu.memory_space<vmem>>, vector<8x128xbf16>
    %18 = arith.truncf %16 : vector<8x128xf32> to vector<8x128xbf16>
    %cst_14 = arith.constant dense<0.000000e+00> : vector<8x8xf32>
    %19 = tpu.matmul %17, %18, %cst_14 {dimension_numbers = #tpu.dot_dimension_numbers<[1], [1], [0], [0], [0, 0, 1, 0], [], []>} : vector<8x128xbf16>, vector<8x128xbf16>, vector<8x8xf32> -> vector<8x8xf32>
    %c0_15 = arith.constant 0 : index
    %c0_16 = arith.constant 0 : index
    %20 = vector.load %arg6[%c0_15, %c0_16] : memref<8x1xf32, #tpu.memory_space<vmem>>, vector<8x1xf32>
    %21 = vector.broadcast %20 : vector<8x1xf32> to vector<8x8xf32>
    %22 = arith.addf %19, %21 : vector<8x8xf32>
    %c0_17 = arith.constant 0 : index
    %c0_18 = arith.constant 0 : index
    %23 = vector.load %arg7[%c0_17, %c0_18] : memref<8x8xf32, #tpu.memory_space<vmem>>, vector<8x8xf32>
    tpu.vector_store %arg7[%c0_17, %c0_18], %22 {strides = array<i32>} : memref<8x8xf32, #tpu.memory_space<vmem>>, vector<8x8xf32>,
    return
  }
}

</mosaic_0001>

<llo_original>
// kernel: _dqn_forward_impl.1
$region0: #{_dqn_forward_impl.1}
  #allocation0 [shape = 'u32[]', space=smem, size = 0x4, offset = 0x4, fixed_abs, tag = 'smem constant byte address 0x4 - core index']
  #allocation1 [shape = 'u32[144,128]{1,0:T(1,128)}', space=vmem, size = 0x12000, scoped, tag = 'internal scratch']
  %s0 = inlined_call_operand.vmem [shape: f32[8,32], index: 0, kind: input, shape index: {}]
  %s1 = inlined_call_operand.hbm [shape: bf16[32,128], index: 1, kind: input, shape index: {}]
  %s2 = inlined_call_operand.hbm [shape: f32[1,128], index: 2, kind: input, shape index: {}]
  %s3 = inlined_call_operand.hbm [shape: bf16[128,128], index: 3, kind: input, shape index: {}]
  %s4 = inlined_call_operand.vmem [shape: f32[1,128], index: 4, kind: input, shape index: {}]
  %s5 = inlined_call_operand.vmem [shape: bf16[8,128], index: 5, kind: input, shape index: {}]
  %s6 = inlined_call_operand.vmem [shape: f32[8,1], index: 6, kind: input, shape index: {}]
  %s7 = inlined_call_operand.vmem [shape: f32[8,8], index: 7, kind: output, shape index: {}]
  %s8 = sld [smem:[#allocation0]]
  $region50: #{_dqn_forward_impl.1} parent=0
    _
  %s10 = ssub.s32 1, %s8
  %s11 = scalar_select 0, %s10, %s8
  $region1: #{_dqn_forward_impl.1} parent=0
    #allocation2 [shape = 'u8[8192]{0}', space=vmem, size = 0x2000, scoped, tag = 'input window, operand 1, single buffered']
    #allocation3 [shape = 's32[1]{0}', space=sflag, size = 0x4, scoped, tag = 'scoped memory for _dqn_forward_impl.1']
    #allocation4 [shape = 'u8[512]{0}', space=vmem, size = 0x400, scoped, tag = 'input window, operand 2, single buffered']
    #allocation5 [shape = 's32[1]{0}', space=sflag, size = 0x4, scoped, tag = 'scoped memory for _dqn_forward_impl.1']
    #allocation6 [shape = 'u8[32768]{0}', space=vmem, size = 0x8000, scoped, tag = 'input window, operand 3, single buffered']
    %12 = vsyncpa [#allocation3], 0
    %13 = vsyncpa [#allocation5], 0
    // Predicated region
    $region2: #{_dqn_forward_impl.1} parent=1 // pred_check
      _
    $region3: #{_dqn_forward_impl.1} parent=1 // pred_check_branch
      %15 = sbr.rel (0) target = $region5
    $region4: #{_dqn_forward_impl.1} parent=1 // pred_region
      _
    $region5: #{_dqn_forward_impl.1} parent=1 // pred_fallthru
      _
    // Predicated region
    $region6: #{_dqn_forward_impl.1} parent=1 // pred_check
      _
    $region7: #{_dqn_forward_impl.1} parent=1 // pred_check_branch
      %17 = sbr.rel (0) target = $region9
    $region8: #{_dqn_forward_impl.1} parent=1 // pred_region
      %s19 = ssub.s32 256, 256
      %20 = vsyncadd [#allocation3], %s19
      %s21 = sshll.u32 [#allocation2], 4
      %s22 = int_to_ptr.vmem [resolvable:$true] %s21
      %27 = dma.hbm_to_vmem [thread:$0]  %s1, 256, %s22, [#allocation3], 64, 64, 4
    $region9: #{_dqn_forward_impl.1} parent=1 // pred_fallthru
      _
    // Predicated region
    $region10: #{_dqn_forward_impl.1} parent=1 // pred_check
      _
    $region11: #{_dqn_forward_impl.1} parent=1 // pred_check_branch
      %29 = sbr.rel (0) target = $region13
    $region12: #{_dqn_forward_impl.1} parent=1 // pred_region
      %s31 = ssub.s32 16, 16
      %32 = vsyncadd [#allocation5], %s31
      %s34 = sshll.u32 [#allocation4], 4
      %s35 = int_to_ptr.vmem [resolvable:$true] %s34
      %37 = dma.hbm_to_vmem [thread:$0]  %s2, 16, %s35, [#allocation5]
    $region13: #{_dqn_forward_impl.1} parent=1 // pred_fallthru
      _
    // Predicated region
    $region14: #{_dqn_forward_impl.1} parent=1 // pred_check
      _
    $region15: #{_dqn_forward_impl.1} parent=1 // pred_check_branch
      %39 = sbr.rel (0) target = $region17
    $region16: #{_dqn_forward_impl.1} parent=1 // pred_region
      %s41 = ssub.s32 1024, 1024
      %42 = vsyncadd [#allocation5], %s41
      %s43 = sshll.u32 [#allocation6], 4
      %s44 = int_to_ptr.vmem [resolvable:$true] %s43
      %49 = dma.hbm_to_vmem [thread:$0]  %s3, 1024, %s44, [#allocation5], 64, 64, 4
    $region17: #{_dqn_forward_impl.1} parent=1 // pred_fallthru
      _
    // Predicated region
    $region18: #{_dqn_forward_impl.1} parent=1 // pred_check
      _
    $region19: #{_dqn_forward_impl.1} parent=1 // pred_check_branch
      %51 = sbr.rel (0) target = $region21
    $region20: #{_dqn_forward_impl.1} parent=1 // pred_region
      _
    $region21: #{_dqn_forward_impl.1} parent=1 // pred_fallthru
      _
    // Predicated region
    $region22: #{_dqn_forward_impl.1} parent=1 // pred_check
      _
    $region23: #{_dqn_forward_impl.1} parent=1 // pred_check_branch
      %53 = sbr.rel (0) target = $region25
    $region24: #{_dqn_forward_impl.1} parent=1 // pred_region
      _
    $region25: #{_dqn_forward_impl.1} parent=1 // pred_fallthru
      _
    // Predicated region
    $region26: #{_dqn_forward_impl.1} parent=1 // pred_check
      _
    $region27: #{_dqn_forward_impl.1} parent=1 // pred_check_branch
      %55 = sbr.rel (0) target = $region29
    $region28: #{_dqn_forward_impl.1} parent=1 // pred_region
      _
    $region29: #{_dqn_forward_impl.1} parent=1 // pred_fallthru
      _
    // Predicated region
    $region30: #{_dqn_forward_impl.1} parent=1 // pred_check
      _
    $region31: #{_dqn_forward_impl.1} parent=1 // pred_check_branch
      %57 = sbr.rel (0) target = $region33
    $region32: #{_dqn_forward_impl.1} parent=1 // pred_region
      %58 = dma.done [#allocation3], 256
    $region33: #{_dqn_forward_impl.1} parent=1 // pred_fallthru
      _
    // Predicated region
    $region34: #{_dqn_forward_impl.1} parent=1 // pred_check
      _
    $region35: #{_dqn_forward_impl.1} parent=1 // pred_check_branch
      %60 = sbr.rel (0) target = $region37
    $region36: #{_dqn_forward_impl.1} parent=1 // pred_region
      %61 = dma.done [#allocation5], 16
    $region37: #{_dqn_forward_impl.1} parent=1 // pred_fallthru
      _
    // Predicated region
    $region38: #{_dqn_forward_impl.1} parent=1 // pred_check
      _
    $region39: #{_dqn_forward_impl.1} parent=1 // pred_check_branch
      %63 = sbr.rel (0) target = $region41
    $region40: #{_dqn_forward_impl.1} parent=1 // pred_region
      %64 = dma.done [#allocation5], 1024
    $region41: #{_dqn_forward_impl.1} parent=1 // pred_fallthru
      _
    %v66 = vld [vmem:[%s0] sm:$0xff]
    %v67 = vpack.c.bf16 %v66, %v66
    %v68 = vld [vmem:[#allocation2] sm:$0xf]
    %v69 = vld [vmem:[#allocation2 + $0x4] sm:$0xf]
    %v70 = vld [vmem:[#allocation2 + $0x8] sm:$0xf]
    %v71 = vld [vmem:[#allocation2 + $0xc] sm:$0xf]
    %v72 = vld [vmem:[#allocation4] sm:$0x1]
    %v74 = vlaneseq
    %v75 = vshrl.u32 %v74, 7
    %v76 = vsub.s32 0, %v75
    %v77 = vrot.slane %v72, %v76
    %v83 = vunpack.c.l.b16 %v68
    %v84 = vunpack.c.l.b16 %v69
    %v85 = vunpack.c.l.b16 %v70
    %v86 = vunpack.c.l.b16 %v71
    %v87 = vpack.c.b16 %v84, %v83
    %v88 = vpack.c.b16 %v86, %v85
    %vm91 = vcmask 261120
    %v93 = vsel %vm91, %v67, 0
    %95 = vmatprep.subr.bf16.mxu0 0
    %96 = vmatpush1.bf16.msra.mxu0 0
    %97 = vmatprep.subr.bf16.mxu0 0
    %98 = vmatpush1.bf16.msra.mxu0 0
    %99 = vmatprep.subr.bf16.mxu0 0
    %100 = vmatpush1.bf16.msra.mxu0 0
    %101 = vmatprep.subr.bf16.mxu0 0
    %102 = vmatpush1.bf16.msra.mxu0 0
    %103 = vmatprep.subr.bf16.mxu0 0
    %104 = vmatpush1.bf16.msra.mxu0 0
    %105 = vmatprep.subr.bf16.mxu0 0
    %106 = vmatpush1.bf16.msra.mxu0 0
    %107 = vmatprep.subr.bf16.mxu0 0
    %108 = vmatpush1.bf16.msra.mxu0 %v88
    %109 = vmatprep.subr.bf16.mxu0 0
    %110 = vmatpush1.bf16.msra.mxu0 %v87
    %111 = vmatprep.subr.bf16.mxu0 0
    %112 = vmatpush2.bf16.msra.mxu0 0
    %113 = vmatprep.subr.bf16.mxu0 0
    %114 = vmatpush2.bf16.msra.mxu0 0
    %115 = vmatprep.subr.bf16.mxu0 0
    %116 = vmatpush2.bf16.msra.mxu0 0
    %117 = vmatprep.subr.bf16.mxu0 0
    %118 = vmatpush2.bf16.msra.mxu0 0
    %119 = vmatprep.subr.bf16.mxu0 0
    %120 = vmatpush2.bf16.msra.mxu0 0
    %121 = vmatprep.subr.bf16.mxu0 0
    %122 = vmatpush2.bf16.msra.mxu0 0
    %123 = vmatprep.subr.bf16.mxu0 0
    %124 = vmatpush2.bf16.msra.mxu0 0
    %125 = vmatprep.subr.bf16.mxu0 0
    %126 = vmatpush2.bf16.msra.mxu0 0
    %127 = vmatprep.mubr.bf16.mxu0 0
    %128 = vmatmul.mubr.bf16.gmra.mxu0 %v93
    %v129 = vpop.f32.mrf.mxu0
    %v130 = vadd.f32 %v77, %v129
    %v131 = vpop.f32.mrf.mxu0
    %v132 = vpop.f32.mrf.mxu0
    %v133 = vpop.f32.mrf.mxu0
    %134 = vdwg.mxu0
    %v135 = vmax.f32 %v130, 0.0
    %v136 = vpack.c.bf16 %v135, %v135
    %v137 = vld [vmem:[#allocation6] sm:$0xf]
    %v138 = vld [vmem:[#allocation6 + $0x4] sm:$0xf]
    %v139 = vld [vmem:[#allocation6 + $0x8] sm:$0xf]
    %v140 = vld [vmem:[#allocation6 + $0xc] sm:$0xf]
    %v141 = vld [vmem:[#allocation6 + $0x10] sm:$0xf]
    %v142 = vld [vmem:[#allocation6 + $0x14] sm:$0xf]
    %v143 = vld [vmem:[#allocation6 + $0x18] sm:$0xf]
    %v144 = vld [vmem:[#allocation6 + $0x1c] sm:$0xf]
    %v145 = vld [vmem:[#allocation6 + $0x20] sm:$0xf]
    %v146 = vld [vmem:[#allocation6 + $0x24] sm:$0xf]
    %v147 = vld [vmem:[#allocation6 + $0x28] sm:$0xf]
    %v148 = vld [vmem:[#allocation6 + $0x2c] sm:$0xf]
    %v149 = vld [vmem:[#allocation6 + $0x30] sm:$0xf]
    %v150 = vld [vmem:[#allocation6 + $0x34] sm:$0xf]
    %v151 = vld [vmem:[#allocation6 + $0x38] sm:$0xf]
    %v152 = vld [vmem:[#allocation6 + $0x3c] sm:$0xf]
    %v153 = vld [vmem:[%s4] sm:$0x1]
    %v155 = vlaneseq
    %v156 = vshrl.u32 %v155, 7
    %v157 = vsub.s32 0, %v156
    %v158 = vrot.slane %v153, %v157
    %v176 = vunpack.c.l.b16 %v137
    %v177 = vunpack.c.l.b16 %v138
    %v178 = vunpack.c.l.b16 %v139
    %v179 = vunpack.c.l.b16 %v140
    %v180 = vunpack.c.l.b16 %v141
    %v181 = vunpack.c.l.b16 %v142
    %v182 = vunpack.c.l.b16 %v143
    %v183 = vunpack.c.l.b16 %v144
    %v184 = vunpack.c.l.b16 %v145
    %v185 = vunpack.c.l.b16 %v146
    %v186 = vunpack.c.l.b16 %v147
    %v187 = vunpack.c.l.b16 %v148
    %v188 = vunpack.c.l.b16 %v149
    %v189 = vunpack.c.l.b16 %v150
    %v190 = vunpack.c.l.b16 %v151
    %v191 = vunpack.c.l.b16 %v152
    %v192 = vpack.c.b16 %v177, %v176
    %v193 = vpack.c.b16 %v179, %v178
    %v194 = vpack.c.b16 %v181, %v180
    %v195 = vpack.c.b16 %v183, %v182
    %v196 = vpack.c.b16 %v185, %v184
    %v197 = vpack.c.b16 %v187, %v186
    %v198 = vpack.c.b16 %v189, %v188
    %v199 = vpack.c.b16 %v191, %v190
    %208 = vmatprep.subr.bf16.mxu0 0
    %209 = vmatpush1.bf16.msra.mxu0 %v199
    %210 = vmatprep.subr.bf16.mxu0 0
    %211 = vmatpush1.bf16.msra.mxu0 %v198
    %212 = vmatprep.subr.bf16.mxu0 0
    %213 = vmatpush1.bf16.msra.mxu0 %v197
    %214 = vmatprep.subr.bf16.mxu0 0
    %215 = vmatpush1.bf16.msra.mxu0 %v196
    %216 = vmatprep.subr.bf16.mxu0 0
    %217 = vmatpush1.bf16.msra.mxu0 %v195
    %218 = vmatprep.subr.bf16.mxu0 0
    %219 = vmatpush1.bf16.msra.mxu0 %v194
    %220 = vmatprep.subr.bf16.mxu0 0
    %221 = vmatpush1.bf16.msra.mxu0 %v193
    %222 = vmatprep.subr.bf16.mxu0 0
    %223 = vmatpush1.bf16.msra.mxu0 %v192
    %224 = vmatprep.subr.bf16.mxu0 0
    %225 = vmatpush2.bf16.msra.mxu0 0
    %226 = vmatprep.subr.bf16.mxu0 0
    %227 = vmatpush2.bf16.msra.mxu0 0
    %228 = vmatprep.subr.bf16.mxu0 0
    %229 = vmatpush2.bf16.msra.mxu0 0
    %230 = vmatprep.subr.bf16.mxu0 0
    %231 = vmatpush2.bf16.msra.mxu0 0
    %232 = vmatprep.subr.bf16.mxu0 0
    %233 = vmatpush2.bf16.msra.mxu0 0
    %234 = vmatprep.subr.bf16.mxu0 0
    %235 = vmatpush2.bf16.msra.mxu0 0
    %236 = vmatprep.subr.bf16.mxu0 0
    %237 = vmatpush2.bf16.msra.mxu0 0
    %238 = vmatprep.subr.bf16.mxu0 0
    %239 = vmatpush2.bf16.msra.mxu0 0
    %240 = vmatprep.mubr.bf16.mxu0 0
    %241 = vmatmul.mubr.bf16.gmra.mxu0 %v136
    %v242 = vpop.f32.mrf.mxu0
    %v243 = vadd.f32 %v158, %v242
    %v244 = vpop.f32.mrf.mxu0
    %v245 = vpop.f32.mrf.mxu0
    %v246 = vpop.f32.mrf.mxu0
    %247 = vdwg.mxu0
    %v248 = vmax.f32 %v243, 0.0
    %v249 = vld [vmem:[%s5] sm:$0xf]
    %v250 = vpack.c.bf16 %v248, %v248
    %v251 = vld [vmem:[%s6] sm:$0xff]
    %253 = vset.pattern.permute.xlu0 0
    %254 = vperm.xlu0 %253, %v251
    %v255 = vpop.permute.xlu0 %254
    %257 = vmatprep.subr.bf16.mxu0 0
    %258 = vmatpush1.bf16.xpose.msra.mxu0 0
    %259 = vmatprep.subr.bf16.mxu0 0
    %260 = vmatpush1.bf16.xpose.msra.mxu0 0
    %261 = vmatprep.subr.bf16.mxu0 0
    %262 = vmatpush1.bf16.xpose.msra.mxu0 0
    %263 = vmatprep.subr.bf16.mxu0 0
    %264 = vmatpush1.bf16.xpose.msra.mxu0 0
    %265 = vmatprep.subr.bf16.mxu0 0
    %266 = vmatpush1.bf16.xpose.msra.mxu0 0
    %267 = vmatprep.subr.bf16.mxu0 0
    %268 = vmatpush1.bf16.xpose.msra.mxu0 0
    %269 = vmatprep.subr.bf16.mxu0 0
    %270 = vmatpush1.bf16.xpose.msra.mxu0 0
    %271 = vmatprep.subr.bf16.mxu0 0
    %272 = vmatpush1.bf16.xpose.msra.mxu0 %v250
    %273 = vmatprep.subr.bf16.mxu0 0
    %274 = vmatpush2.bf16.xpose.msra.mxu0 0
    %275 = vmatprep.subr.bf16.mxu0 0
    %276 = vmatpush2.bf16.xpose.msra.mxu0 0
    %277 = vmatprep.subr.bf16.mxu0 0
    %278 = vmatpush2.bf16.xpose.msra.mxu0 0
    %279 = vmatprep.subr.bf16.mxu0 0
    %280 = vmatpush2.bf16.xpose.msra.mxu0 0
    %281 = vmatprep.subr.bf16.mxu0 0
    %282 = vmatpush2.bf16.xpose.msra.mxu0 0
    %283 = vmatprep.subr.bf16.mxu0 0
    %284 = vmatpush2.bf16.xpose.msra.mxu0 0
    %285 = vmatprep.subr.bf16.mxu0 0
    %286 = vmatpush2.bf16.xpose.msra.mxu0 0
    %287 = vmatprep.subr.bf16.mxu0 0
    %288 = vmatpush2.bf16.xpose.msra.mxu0 0
    %289 = vmatprep.mubr.bf16.mxu0 0
    %290 = vmatmul.mubr.bf16.gmra.mxu0 %v249
    %v291 = vpop.f32.mrf.mxu0
    %v292 = vadd.f32 %v255, %v291
    %v293 = vpop.f32.mrf.mxu0
    %v294 = vpop.f32.mrf.mxu0
    %v295 = vpop.f32.mrf.mxu0
    %296 = vdwg.mxu0
    %vm297 = vcmask 64512
    %298 = vst.msk [vmem:[%s7] sm:$0xff] %vm297, %v292
    // Predicated region
    $region42: #{_dqn_forward_impl.1} parent=1 // pred_check
      _
    $region43: #{_dqn_forward_impl.1} parent=1 // pred_check_branch
      %300 = sbr.rel (0) target = $region45
    $region44: #{_dqn_forward_impl.1} parent=1 // pred_region
      _
    $region45: #{_dqn_forward_impl.1} parent=1 // pred_fallthru
      _
    // Predicated region
    $region46: #{_dqn_forward_impl.1} parent=1 // pred_check
      _
    $region47: #{_dqn_forward_impl.1} parent=1 // pred_check_branch
      %302 = sbr.rel (0) target = $region49
    $region48: #{_dqn_forward_impl.1} parent=1 // pred_region
      _
    $region49: #{_dqn_forward_impl.1} parent=1 // pred_fallthru
      _
    %303 = vsyncpa [#allocation3], 1
    %304 = vsyncpa [#allocation5], 1

</llo_original>
